<compile_context>
chip_gen: v7x
topology: tpu7x:2x2x1
jax: 0.10.0
libtpu: 0.0.40
codegen_flags: <defaults>
</compile_context>

<pallas_src>
import math

import jax
import jax.numpy as jnp
from jax.experimental import pallas as pl
from jax.experimental.pallas import tpu as pltpu

d_k = 64
d_v = 64


def _sdpa_kernel(q_ref, k_ref, v_ref, mask_ref, ctx_ref, attn_ref):
    # Block shapes: q (G, TQ, d_k), k (G, Lk, d_k), v (G, Lk, d_v),
    #               mask (G, TQ, Lk) int8 (nonzero == masked out).
    q = q_ref[...]
    k = k_ref[...]
    v = v_ref[...]
    m = mask_ref[...]

    # Scale Q before the matmul: touches d_k columns instead of Lk columns.
    scale = jnp.float32(1.0 / math.sqrt(d_k))
    qs = (q.astype(jnp.float32) * scale).astype(q.dtype)

    # scores = Q @ K^T without materializing a transpose of K
    # (contract the last dims directly on the MXU, batched over G heads).
    scores = jnp.einsum(
        "gqd,gkd->gqk", qs, k, preferred_element_type=jnp.float32
    )

    # masked_fill_(attn_mask, -1e9)
    scores = jnp.where(m != 0, jnp.float32(-1000000000.0), scores)

    # Numerically stable softmax over the key axis.
    smax = jnp.max(scores, axis=-1, keepdims=True)
    p = jnp.exp(scores - smax)
    denom = jnp.sum(p, axis=-1, keepdims=True)
    # EUP reciprocal (separate VLIW slot) instead of VALU divides over [TQ,Lk].
    attn = p * pl.reciprocal(denom, approx=True)

    attn_ref[...] = attn.astype(attn_ref.dtype)

    # context = attn @ V (f32 accumulation on the MXU).
    ctx = jnp.einsum(
        "gqk,gkd->gqd", attn.astype(v.dtype), v,
        preferred_element_type=jnp.float32,
    )
    ctx_ref[...] = ctx.astype(ctx_ref.dtype)


def _choose_tiles(BH, Lq, Lk, dk, dv, in_itemsize, out_itemsize,
                  block_budget_bytes=3 * 1024 * 1024):
    """Pick (G heads/step, TQ q-rows/step) so one step's blocks stay small
    enough for the v5e 16 MiB scoped-VMEM default (with double-buffering)."""
    # Q-row tile: whole Lq when small, otherwise a 8-aligned divisor.
    if Lq <= 256:
        tq = Lq
    else:
        tq = 256
        while tq > 8 and Lq % tq != 0:
            tq //= 2
        if Lq % tq != 0:
            tq = Lq  # fall back to whole sequence

    def block_bytes(g):
        b_in = g * (tq * dk + Lk * dk + Lk * dv) * in_itemsize
        b_mask = g * tq * Lk                       # int8 mask
        b_out = g * (tq * dv + tq * Lk) * out_itemsize
        b_tmp = 2 * g * tq * Lk * 4                # f32 scores / probs temps
        return b_in + b_mask + b_out + b_tmp

    g = 1
    for cand in range(min(BH, 8), 0, -1):
        if BH % cand == 0 and block_bytes(cand) <= block_budget_bytes:
            g = cand
            break
    return g, tq


def scaled_dot_product_attention(Q, K, V, attn_mask):
    """Q:[B,H,Lq,d_k], K:[B,H,Lk,d_k], V:[B,H,Lk,d_v], attn_mask:[B,H,Lq,Lk].

    Returns (context [B,H,Lq,d_v], attn [B,H,Lq,Lk]) like the PyTorch module.
    """
    B, H, Lq, dk = Q.shape
    Lk = K.shape[2]
    dv = V.shape[3]
    assert dk == d_k and dv == d_v

    BH = B * H
    out_dtype = Q.dtype

    # Keep Q/K/V in their native dtype (bf16 stays bf16 for the MXU).
    q = Q.reshape(BH, Lq, dk)
    k = K.reshape(BH, Lk, dk)
    v = V.reshape(BH, Lk, dv)
    # Mask as int8: 1 byte/element of DMA instead of 4.
    m = attn_mask.reshape(BH, Lq, Lk).astype(jnp.int8)

    in_itemsize = jnp.dtype(q.dtype).itemsize
    out_itemsize = jnp.dtype(out_dtype).itemsize
    G, TQ = _choose_tiles(BH, Lq, Lk, dk, dv, in_itemsize, out_itemsize)
    assert BH % G == 0 and Lq % TQ == 0
    grid = (BH // G, Lq // TQ)

    # Advisory cost hint for XLA scheduling around the custom call.
    flops = 2 * BH * Lq * Lk * (dk + dv)
    bytes_accessed = (
        q.size * in_itemsize + k.size * in_itemsize + v.size * in_itemsize
        + m.size
        + BH * Lq * dv * out_itemsize
        + BH * Lq * Lk * out_itemsize
    )
    cost = pl.CostEstimate(
        flops=flops, transcendentals=BH * Lq * Lk, bytes_accessed=bytes_accessed
    )

    ctx, attn = pl.pallas_call(
        _sdpa_kernel,
        out_shape=(
            jax.ShapeDtypeStruct((BH, Lq, dv), out_dtype),
            jax.ShapeDtypeStruct((BH, Lq, Lk), out_dtype),
        ),
        grid_spec=pltpu.PrefetchScalarGridSpec(
            num_scalar_prefetch=0,
            grid=grid,
            in_specs=[
                pl.BlockSpec((G, TQ, dk), lambda g, qi: (g, qi, 0)),
                pl.BlockSpec((G, Lk, dk), lambda g, qi: (g, 0, 0)),
                pl.BlockSpec((G, Lk, dv), lambda g, qi: (g, 0, 0)),
                pl.BlockSpec((G, TQ, Lk), lambda g, qi: (g, qi, 0)),
            ],
            out_specs=[
                pl.BlockSpec((G, TQ, dv), lambda g, qi: (g, qi, 0)),
                pl.BlockSpec((G, TQ, Lk), lambda g, qi: (g, qi, 0)),
            ],
        ),
        compiler_params=pltpu.CompilerParams(
            # Both grid axes are fully independent -> megacore/TC sharding.
            dimension_semantics=("parallel", "parallel"),
        ),
        cost_estimate=cost,
    )(q, k, v, m)

    # TODO(synk): ctx's last dim (d_v=64) is below the 128-lane width; packing
    # two heads' ctx into one lane-dense slab would help if store-slot bound.
    return ctx.reshape(B, H, Lq, dv), attn.reshape(B, H, Lq, Lk)


def _reference(Q, K, V, attn_mask):
    scores = jnp.einsum("bhqd,bhkd->bhqk", Q.astype(jnp.float32),
                        K.astype(jnp.float32)) / jnp.sqrt(jnp.float32(d_k))
    scores = jnp.where(attn_mask, -1000000000.0, scores)
    attn = jax.nn.softmax(scores, axis=-1)
    ctx = jnp.einsum("bhqk,bhkd->bhqd", attn, V.astype(jnp.float32))
    return ctx, attn


if __name__ == "__main__":
    B, H, L = 2, 2, 8  # small shapes; d_k = d_v = 64 per the module definition
    key = jax.random.PRNGKey(0)
    kq, kk, kv, km = jax.random.split(key, 4)

    Q = jax.random.normal(kq, (B, H, L, d_k), dtype=jnp.float32)
    K = jax.random.normal(kk, (B, H, L, d_k), dtype=jnp.float32)
    V = jax.random.normal(kv, (B, H, L, d_v), dtype=jnp.float32)
    # random padding-style mask (True = masked out)
    attn_mask = jax.random.bernoulli(km, p=0.3, shape=(B, H, L, L))

    ctx, attn = scaled_dot_product_attention(Q, K, V, attn_mask)
    jax.block_until_ready((ctx, attn))

    ctx_ref, attn_ref = _reference(Q, K, V, attn_mask)
    # Tolerance accommodates the EUP approx-reciprocal softmax normalization.
    assert jnp.allclose(ctx, ctx_ref, atol=5e-3, rtol=5e-3)
    assert jnp.allclose(attn, attn_ref, atol=5e-3, rtol=5e-3)

    print("KERNEL_OK")
</pallas_src>

<mosaic_0001>
module attributes {stable_mosaic.version = 11 : i64} {
  func.func @_sdpa_kernel(%arg0: i32, %arg1: i32, %arg2: memref<4x8x64xf32, #tpu.memory_space<vmem>>, %arg3: memref<4x8x64xf32, #tpu.memory_space<vmem>>, %arg4: memref<4x8x64xf32, #tpu.memory_space<vmem>>, %arg5: memref<4x8x8xi8, #tpu.memory_space<vmem>>, %arg6: memref<4x8x64xf32, #tpu.memory_space<vmem>>, %arg7: memref<4x8x8xf32, #tpu.memory_space<vmem>>) attributes {dimension_semantics = [#tpu.dimension_semantics<parallel>, #tpu.dimension_semantics<parallel>], iteration_bounds = array<i64: 1, 1>, scalar_prefetch = 0 : i64, scratch_operands = 0 : i64, tpu.core_type = #tpu.core_type<tc>, window_params = [{transform_indices = @transform_0, window_bounds = array<i64: 4, 8, 64>}, {transform_indices = @transform_1, window_bounds = array<i64: 4, 8, 64>}, {transform_indices = @transform_2, window_bounds = array<i64: 4, 8, 64>}, {transform_indices = @transform_3, window_bounds = array<i64: 4, 8, 8>}, {transform_indices = @transform_4, window_bounds = array<i64: 4, 8, 64>}, {transform_indices = @transform_5, window_bounds = array<i64: 4, 8, 8>}]} {
    %c0 = arith.constant 0 : index
    %c0_0 = arith.constant 0 : index
    %c0_1 = arith.constant 0 : index
    %0 = vector.load %arg2[%c0, %c0_0, %c0_1] : memref<4x8x64xf32, #tpu.memory_space<vmem>>, vector<4x8x64xf32>
    %c0_2 = arith.constant 0 : index
    %c0_3 = arith.constant 0 : index
    %c0_4 = arith.constant 0 : index
    %1 = vector.load %arg3[%c0_2, %c0_3, %c0_4] : memref<4x8x64xf32, #tpu.memory_space<vmem>>, vector<4x8x64xf32>
    %c0_5 = arith.constant 0 : index
    %c0_6 = arith.constant 0 : index
    %c0_7 = arith.constant 0 : index
    %2 = vector.load %arg4[%c0_5, %c0_6, %c0_7] : memref<4x8x64xf32, #tpu.memory_space<vmem>>, vector<4x8x64xf32>
    %c0_8 = arith.constant 0 : index
    %c0_9 = arith.constant 0 : index
    %c0_10 = arith.constant 0 : index
    %3 = vector.load %arg5[%c0_8, %c0_9, %c0_10] : memref<4x8x8xi8, #tpu.memory_space<vmem>>, vector<4x8x8xi8>
    %cst = arith.constant 1.250000e-01 : f32
    %4 = vector.broadcast %cst : f32 to vector<4x8x64xf32>
    %5 = arith.mulf %0, %4 : vector<4x8x64xf32>
    "tpu.trace_start"() <{level = 10 : i32, message = "gqd,gkd->gqk"}> : () -> ()
    %cst_11 = arith.constant dense<0.000000e+00> : vector<4x8x8xf32>
    %6 = tpu.matmul %5, %1, %cst_11 {dimension_numbers = #tpu.dot_dimension_numbers<[2], [2], [1], [1], [0, 0, 0, 1, 1, 1], [0], [0]>} : vector<4x8x64xf32>, vector<4x8x64xf32>, vector<4x8x8xf32> -> vector<4x8x8xf32>
    %c0_i8 = arith.constant 0 : i8
    "tpu.trace_stop"() : () -> ()
    %7 = vector.broadcast %c0_i8 : i8 to vector<4x8x8xi8>
    %8 = arith.cmpi ne, %3, %7 : vector<4x8x8xi8>
    %cst_12 = arith.constant -1.000000e+09 : f32
    %9 = vector.broadcast %cst_12 : f32 to vector<4x8x8xf32>
    %10 = arith.select %8, %9, %6 : vector<4x8x8xi1>, vector<4x8x8xf32>
    %cst_13 = arith.constant dense<0xFF800000> : vector<4x8xf32>
    %11 = vector.multi_reduction <maximumf>, %10, %cst_13 [2] : vector<4x8x8xf32> to vector<4x8xf32>
    %12 = vector.shape_cast %11 : vector<4x8xf32> to vector<4x8x1xf32>
    %13 = vector.broadcast %12 : vector<4x8x1xf32> to vector<4x8x8xf32>
    %14 = arith.subf %10, %13 : vector<4x8x8xf32>
    %15 = math.exp %14 : vector<4x8x8xf32>
    %cst_14 = arith.constant dense<0.000000e+00> : vector<4x8xf32>
    %16 = vector.multi_reduction <add>, %15, %cst_14 [2] : vector<4x8x8xf32> to vector<4x8xf32>
    %17 = vector.shape_cast %16 : vector<4x8xf32> to vector<4x8x1xf32>
    %18 = tpu.reciprocal %17 {approx = true} : vector<4x8x1xf32> -> vector<4x8x1xf32>
    %19 = vector.broadcast %18 : vector<4x8x1xf32> to vector<4x8x8xf32>
    %20 = arith.mulf %15, %19 : vector<4x8x8xf32>
    %c0_15 = arith.constant 0 : index
    %c0_16 = arith.constant 0 : index
    %c0_17 = arith.constant 0 : index
    %21 = vector.load %arg7[%c0_15, %c0_16, %c0_17] : memref<4x8x8xf32, #tpu.memory_space<vmem>>, vector<4x8x8xf32>
    tpu.vector_store %arg7[%c0_15, %c0_16, %c0_17], %20 {strides = array<i32>} : memref<4x8x8xf32, #tpu.memory_space<vmem>>, vector<4x8x8xf32>,
    "tpu.trace_start"() <{level = 10 : i32, message = "gqk,gkd->gqd"}> : () -> ()
    %cst_18 = arith.constant dense<0.000000e+00> : vector<4x8x64xf32>
    %22 = tpu.matmul %20, %2, %cst_18 {dimension_numbers = #tpu.dot_dimension_numbers<[2], [1], [1], [2], [0, 0, 0, 1, 1, 2], [0], [0]>} : vector<4x8x8xf32>, vector<4x8x64xf32>, vector<4x8x64xf32> -> vector<4x8x64xf32>
    "tpu.trace_stop"() : () -> ()
    %c0_19 = arith.constant 0 : index
    %c0_20 = arith.constant 0 : index
    %c0_21 = arith.constant 0 : index
    %23 = vector.load %arg6[%c0_19, %c0_20, %c0_21] : memref<4x8x64xf32, #tpu.memory_space<vmem>>, vector<4x8x64xf32>
    tpu.vector_store %arg6[%c0_19, %c0_20, %c0_21], %22 {strides = array<i32>} : memref<4x8x64xf32, #tpu.memory_space<vmem>>, vector<4x8x64xf32>,
    return
  }
  func.func @transform_0(%arg0: i32, %arg1: i32) -> (i32, i32, i32) {
    %c0_i32 = arith.constant 0 : i32
    %c0_i32_0 = arith.constant 0 : i32
    return %arg0, %arg1, %c0_i32 : i32, i32, i32
  }
  func.func @transform_1(%arg0: i32, %arg1: i32) -> (i32, i32, i32) {
    %c0_i32 = arith.constant 0 : i32
    %c0_i32_0 = arith.constant 0 : i32
    %c0_i32_1 = arith.constant 0 : i32
    return %arg0, %c0_i32, %c0_i32_0 : i32, i32, i32
  }
  func.func @transform_2(%arg0: i32, %arg1: i32) -> (i32, i32, i32) {
    %c0_i32 = arith.constant 0 : i32
    %c0_i32_0 = arith.constant 0 : i32
    %c0_i32_1 = arith.constant 0 : i32
    return %arg0, %c0_i32, %c0_i32_0 : i32, i32, i32
  }
  func.func @transform_3(%arg0: i32, %arg1: i32) -> (i32, i32, i32) {
    %c0_i32 = arith.constant 0 : i32
    %c0_i32_0 = arith.constant 0 : i32
    return %arg0, %arg1, %c0_i32 : i32, i32, i32
  }
  func.func @transform_4(%arg0: i32, %arg1: i32) -> (i32, i32, i32) {
    %c0_i32 = arith.constant 0 : i32
    %c0_i32_0 = arith.constant 0 : i32
    return %arg0, %arg1, %c0_i32 : i32, i32, i32
  }
  func.func @transform_5(%arg0: i32, %arg1: i32) -> (i32, i32, i32) {
    %c0_i32 = arith.constant 0 : i32
    %c0_i32_0 = arith.constant 0 : i32
    return %arg0, %arg1, %c0_i32 : i32, i32, i32
  }
}

</mosaic_0001>

<llo_original>
// kernel: tpu_custom_call.1
$region0: #{tpu_custom_call.1}
  #allocation0 [shape = 'u32[]', space=smem, size = 0x4, offset = 0x4, fixed_abs, tag = 'smem constant byte address 0x4 - core index']
  #allocation1 [shape = 'u32[144,128]{1,0:T(1,128)}', space=vmem, size = 0x12000, scoped, tag = 'internal scratch']
  %s0 = inlined_call_operand.hbm [shape: f32[4,8,64], index: 0, kind: input, shape index: {}]
  %s1 = inlined_call_operand.hbm [shape: f32[4,8,64], index: 1, kind: input, shape index: {}]
  %s2 = inlined_call_operand.hbm [shape: f32[4,8,64], index: 2, kind: input, shape index: {}]
  %s3 = inlined_call_operand.vmem [shape: s8[4,8,8], index: 3, kind: input, shape index: {}]
  %s4 = inlined_call_operand.hbm [shape: f32[4,8,64], index: 4, kind: output, shape index: {0}]
  %s5 = inlined_call_operand.hbm [shape: f32[4,8,8], index: 5, kind: output, shape index: {1}]
  %6 = xla_tuple %s4, %s5
  %s7 = sld [smem:[#allocation0]]
  $region46: #{tpu_custom_call.1} parent=0
    _
  %s9 = ssub.s32 1, %s7
  %s10 = scalar_select 0, %s9, %s7
  $region1: #{tpu_custom_call.1} parent=0
    #allocation2 [shape = 'u8[16384]{0}', space=vmem, size = 0x4000, scoped, tag = 'input window, operand 0, single buffered']
    #allocation3 [shape = 's32[1]{0}', space=sflag, size = 0x4, scoped, tag = 'scoped memory for tpu_custom_call.1']
    #allocation4 [shape = 's32[1]{0}', space=sflag, size = 0x4, scoped, tag = 'scoped memory for tpu_custom_call.1']
    #allocation5 [shape = 'u8[16384]{0}', space=vmem, size = 0x4000, scoped, tag = 'input window, operand 1, single buffered']
    #allocation6 [shape = 's32[1]{0}', space=sflag, size = 0x4, scoped, tag = 'scoped memory for tpu_custom_call.1']
    #allocation7 [shape = 'u8[16384]{0}', space=vmem, size = 0x4000, scoped, tag = 'input window, operand 2, single buffered']
    #allocation8 [shape = 'u8[16384]{0}', space=vmem, size = 0x4000, scoped, tag = 'output window, operand 0, single buffered']
    #allocation9 [shape = 'u8[16384]{0}', space=vmem, size = 0x4000, scoped, tag = 'output window, operand 1, single buffered']
    #allocation10 [shape = 's32[1]{0}', space=sflag, size = 0x4, scoped, tag = 'scoped memory for tpu_custom_call.1']
    %11 = vsyncpa [#allocation3], 0
    %12 = vsyncpa [#allocation6], 0
    %13 = vsyncpa [#allocation4], 0
    %14 = vsyncpa [#allocation10], 0
    // Predicated region
    $region2: #{tpu_custom_call.1} parent=1 // pred_check
      _
    $region3: #{tpu_custom_call.1} parent=1 // pred_check_branch
      %16 = sbr.rel (0) target = $region5
    $region4: #{tpu_custom_call.1} parent=1 // pred_region
      %s18 = ssub.s32 512, 512
      %19 = vsyncadd [#allocation3], %s18
      %s20 = sshll.u32 [#allocation2], 4
      %s21 = int_to_ptr.vmem [resolvable:$true] %s20
      %26 = dma.hbm_to_vmem [thread:$0]  %s0, 512, %s21, [#allocation3], 128, 128, 8
    $region5: #{tpu_custom_call.1} parent=1 // pred_fallthru
      _
    // Predicated region
    $region6: #{tpu_custom_call.1} parent=1 // pred_check
      _
    $region7: #{tpu_custom_call.1} parent=1 // pred_check_branch
      %28 = sbr.rel (0) target = $region9
    $region8: #{tpu_custom_call.1} parent=1 // pred_region
      %s30 = ssub.s32 512, 512
      %31 = vsyncadd [#allocation6], %s30
      %s32 = sshll.u32 [#allocation5], 4
      %s33 = int_to_ptr.vmem [resolvable:$true] %s32
      %38 = dma.hbm_to_vmem [thread:$0]  %s1, 512, %s33, [#allocation6], 128, 128, 8
    $region9: #{tpu_custom_call.1} parent=1 // pred_fallthru
      _
    // Predicated region
    $region10: #{tpu_custom_call.1} parent=1 // pred_check
      _
    $region11: #{tpu_custom_call.1} parent=1 // pred_check_branch
      %40 = sbr.rel (0) target = $region13
    $region12: #{tpu_custom_call.1} parent=1 // pred_region
      %s42 = ssub.s32 512, 512
      %43 = vsyncadd [#allocation6], %s42
      %s44 = sshll.u32 [#allocation7], 4
      %s45 = int_to_ptr.vmem [resolvable:$true] %s44
      %50 = dma.hbm_to_vmem [thread:$0]  %s2, 512, %s45, [#allocation6], 128, 128, 8
    $region13: #{tpu_custom_call.1} parent=1 // pred_fallthru
      _
    // Predicated region
    $region14: #{tpu_custom_call.1} parent=1 // pred_check
      _
    $region15: #{tpu_custom_call.1} parent=1 // pred_check_branch
      %52 = sbr.rel (0) target = $region17
    $region16: #{tpu_custom_call.1} parent=1 // pred_region
      _
    $region17: #{tpu_custom_call.1} parent=1 // pred_fallthru
      _
    // Predicated region
    $region18: #{tpu_custom_call.1} parent=1 // pred_check
      _
    $region19: #{tpu_custom_call.1} parent=1 // pred_check_branch
      %54 = sbr.rel (0) target = $region21
    $region20: #{tpu_custom_call.1} parent=1 // pred_region
      %55 = dma.done [#allocation3], 512
    $region21: #{tpu_custom_call.1} parent=1 // pred_fallthru
      _
    // Predicated region
    $region22: #{tpu_custom_call.1} parent=1 // pred_check
      _
    $region23: #{tpu_custom_call.1} parent=1 // pred_check_branch
      %57 = sbr.rel (0) target = $region25
    $region24: #{tpu_custom_call.1} parent=1 // pred_region
      %58 = dma.done [#allocation6], 512
    $region25: #{tpu_custom_call.1} parent=1 // pred_fallthru
      _
    // Predicated region
    $region26: #{tpu_custom_call.1} parent=1 // pred_check
      _
    $region27: #{tpu_custom_call.1} parent=1 // pred_check_branch
      %60 = sbr.rel (0) target = $region29
    $region28: #{tpu_custom_call.1} parent=1 // pred_region
      %61 = dma.done [#allocation6], 512
    $region29: #{tpu_custom_call.1} parent=1 // pred_fallthru
      _
    %v64 = vld [vmem:[#allocation2] sm:$0xff]
    %v65 = vld [vmem:[#allocation2 + $0x8] sm:$0xff]
    %v66 = vld [vmem:[#allocation2 + $0x10] sm:$0xff]
    %v67 = vld [vmem:[#allocation2 + $0x18] sm:$0xff]
    %v68 = vld [vmem:[#allocation5] sm:$0xff]
    %v69 = vld [vmem:[#allocation5 + $0x8] sm:$0xff]
    %v70 = vld [vmem:[#allocation5 + $0x10] sm:$0xff]
    %v71 = vld [vmem:[#allocation5 + $0x18] sm:$0xff]
    %v72 = vld [vmem:[#allocation7] sm:$0xff]
    %v73 = vld [vmem:[#allocation7 + $0x8] sm:$0xff]
    %v74 = vld [vmem:[#allocation7 + $0x10] sm:$0xff]
    %v75 = vld [vmem:[#allocation7 + $0x18] sm:$0xff]
    %v76 = vld [vmem:[%s3] sm:$0x3]
    %v77 = vld [vmem:[%s3 + $0x2] sm:$0x3]
    %v78 = vld [vmem:[%s3 + $0x4] sm:$0x3]
    %v79 = vld [vmem:[%s3 + $0x6] sm:$0x3]
    %v80 = vmul.f32 %v64, 0.125
    %v81 = vmul.f32 %v65, 0.125
    %v82 = vmul.f32 %v66, 0.125
    %v83 = vmul.f32 %v67, 0.125
    %vm84 = vcmask 523264
    %v86 = vsel %vm84, %v80, 0
    %v89 = vsel %vm84, %v68, 0
    %91 = vmatprep.subr.mxu0 0.0
    %92 = vmatpush1.xpose.msra.mxu0 %v89
    %93 = vmatprep.subr.mxu0 0.0
    %94 = vmatpush1.xpose.msra.mxu0 0.0
    %95 = vmatprep.subr.mxu0 0.0
    %96 = vmatpush1.xpose.msra.mxu0 0.0
    %97 = vmatprep.subr.mxu0 0.0
    %98 = vmatpush1.xpose.msra.mxu0 0.0
    %99 = vmatprep.subr.mxu0 0.0
    %100 = vmatpush1.xpose.msra.mxu0 0.0
    %101 = vmatprep.subr.mxu0 0.0
    %102 = vmatpush1.xpose.msra.mxu0 0.0
    %103 = vmatprep.subr.mxu0 0.0
    %104 = vmatpush1.xpose.msra.mxu0 0.0
    %105 = vmatprep.subr.mxu0 0.0
    %106 = vmatpush1.xpose.msra.mxu0 0.0
    %107 = vmatprep.subr.mxu0 0.0
    %108 = vmatpush1.xpose.msra.mxu0 0.0
    %109 = vmatprep.subr.mxu0 0.0
    %110 = vmatpush1.xpose.msra.mxu0 0.0
    %111 = vmatprep.subr.mxu0 0.0
    %112 = vmatpush1.xpose.msra.mxu0 0.0
    %113 = vmatprep.subr.mxu0 0.0
    %114 = vmatpush1.xpose.msra.mxu0 0.0
    %115 = vmatprep.subr.mxu0 0.0
    %116 = vmatpush1.xpose.msra.mxu0 0.0
    %117 = vmatprep.subr.mxu0 0.0
    %118 = vmatpush1.xpose.msra.mxu0 0.0
    %119 = vmatprep.subr.mxu0 0.0
    %120 = vmatpush1.xpose.msra.mxu0 0.0
    %121 = vmatprep.subr.mxu0 0.0
    %122 = vmatpush1.xpose.msra.mxu0 0.0
    %123 = vmatprep.subr.mxu0 0.0
    %124 = vmatpush1.xpose.msra.mxu0 0.0
    %125 = vmatprep.subr.mxu0 0.0
    %126 = vmatpush1.xpose.msra.mxu0 0.0
    %127 = vmatprep.subr.mxu0 0.0
    %128 = vmatpush1.xpose.msra.mxu0 0.0
    %129 = vmatprep.subr.mxu0 0.0
    %130 = vmatpush1.xpose.msra.mxu0 0.0
    %131 = vmatprep.subr.mxu0 0.0
    %132 = vmatpush1.xpose.msra.mxu0 0.0
    %133 = vmatprep.subr.mxu0 0.0
    %134 = vmatpush1.xpose.msra.mxu0 0.0
    %135 = vmatprep.subr.mxu0 0.0
    %136 = vmatpush1.xpose.msra.mxu0 0.0
    %137 = vmatprep.subr.mxu0 0.0
    %138 = vmatpush1.xpose.msra.mxu0 0.0
    %139 = vmatprep.subr.mxu0 0.0
    %140 = vmatpush1.xpose.msra.mxu0 0.0
    %141 = vmatprep.subr.mxu0 0.0
    %142 = vmatpush1.xpose.msra.mxu0 0.0
    %143 = vmatprep.subr.mxu0 0.0
    %144 = vmatpush1.xpose.msra.mxu0 0.0
    %145 = vmatprep.subr.mxu0 0.0
    %146 = vmatpush1.xpose.msra.mxu0 0.0
    %147 = vmatprep.subr.mxu0 0.0
    %148 = vmatpush1.xpose.msra.mxu0 0.0
    %149 = vmatprep.subr.mxu0 0.0
    %150 = vmatpush1.xpose.msra.mxu0 0.0
    %151 = vmatprep.subr.mxu0 0.0
    %152 = vmatpush1.xpose.msra.mxu0 0.0
    %153 = vmatprep.subr.mxu0 0.0
    %154 = vmatpush1.xpose.msra.mxu0 0.0
    %155 = vmatprep.mubr.f32.mxu0 0.0
    %156 = vmatmul.mubr.f32.gmra.mrb[0].mxu0 %v86
    %v157 = vpop.f32.mrb[0].mxu0
    %v158 = vadd.f32 0.0, %v157
    %v159 = vpop.f32.mrb[0].mxu0
    %160 = vdwg.mxu0
    %v162 = vsel %vm84, %v81, 0
    %v165 = vsel %vm84, %v69, 0
    %167 = vmatprep.subr.mxu0 0.0
    %168 = vmatpush1.xpose.msra.mxu0 %v165
    %169 = vmatprep.subr.mxu0 0.0
    %170 = vmatpush1.xpose.msra.mxu0 0.0
    %171 = vmatprep.subr.mxu0 0.0
    %172 = vmatpush1.xpose.msra.mxu0 0.0
    %173 = vmatprep.subr.mxu0 0.0
    %174 = vmatpush1.xpose.msra.mxu0 0.0
    %175 = vmatprep.subr.mxu0 0.0
    %176 = vmatpush1.xpose.msra.mxu0 0.0
    %177 = vmatprep.subr.mxu0 0.0
    %178 = vmatpush1.xpose.msra.mxu0 0.0
    %179 = vmatprep.subr.mxu0 0.0
    %180 = vmatpush1.xpose.msra.mxu0 0.0
    %181 = vmatprep.subr.mxu0 0.0
    %182 = vmatpush1.xpose.msra.mxu0 0.0
    %183 = vmatprep.subr.mxu0 0.0
    %184 = vmatpush1.xpose.msra.mxu0 0.0
    %185 = vmatprep.subr.mxu0 0.0
    %186 = vmatpush1.xpose.msra.mxu0 0.0
    %187 = vmatprep.subr.mxu0 0.0
    %188 = vmatpush1.xpose.msra.mxu0 0.0
    %189 = vmatprep.subr.mxu0 0.0
    %190 = vmatpush1.xpose.msra.mxu0 0.0
    %191 = vmatprep.subr.mxu0 0.0
    %192 = vmatpush1.xpose.msra.mxu0 0.0
    %193 = vmatprep.subr.mxu0 0.0
    %194 = vmatpush1.xpose.msra.mxu0 0.0
    %195 = vmatprep.subr.mxu0 0.0
    %196 = vmatpush1.xpose.msra.mxu0 0.0
    %197 = vmatprep.subr.mxu0 0.0
    %198 = vmatpush1.xpose.msra.mxu0 0.0
    %199 = vmatprep.subr.mxu0 0.0
    %200 = vmatpush1.xpose.msra.mxu0 0.0
    %201 = vmatprep.subr.mxu0 0.0
    %202 = vmatpush1.xpose.msra.mxu0 0.0
    %203 = vmatprep.subr.mxu0 0.0
    %204 = vmatpush1.xpose.msra.mxu0 0.0
    %205 = vmatprep.subr.mxu0 0.0
    %206 = vmatpush1.xpose.msra.mxu0 0.0
    %207 = vmatprep.subr.mxu0 0.0
    %208 = vmatpush1.xpose.msra.mxu0 0.0
    %209 = vmatprep.subr.mxu0 0.0
    %210 = vmatpush1.xpose.msra.mxu0 0.0
    %211 = vmatprep.subr.mxu0 0.0
    %212 = vmatpush1.xpose.msra.mxu0 0.0
    %213 = vmatprep.subr.mxu0 0.0
    %214 = vmatpush1.xpose.msra.mxu0 0.0
    %215 = vmatprep.subr.mxu0 0.0
    %216 = vmatpush1.xpose.msra.mxu0 0.0
    %217 = vmatprep.subr.mxu0 0.0
    %218 = vmatpush1.xpose.msra.mxu0 0.0
    %219 = vmatprep.subr.mxu0 0.0
    %220 = vmatpush1.xpose.msra.mxu0 0.0
    %221 = vmatprep.subr.mxu0 0.0
    %222 = vmatpush1.xpose.msra.mxu0 0.0
    %223 = vmatprep.subr.mxu0 0.0
    %224 = vmatpush1.xpose.msra.mxu0 0.0
    %225 = vmatprep.subr.mxu0 0.0
    %226 = vmatpush1.xpose.msra.mxu0 0.0
    %227 = vmatprep.subr.mxu0 0.0
    %228 = vmatpush1.xpose.msra.mxu0 0.0
    %229 = vmatprep.subr.mxu0 0.0
    %230 = vmatpush1.xpose.msra.mxu0 0.0
    %231 = vmatprep.mubr.f32.mxu0 0.0
    %232 = vmatmul.mubr.f32.gmra.mrb[0].mxu0 %v162
    %v233 = vpop.f32.mrb[0].mxu0
    %v234 = vadd.f32 0.0, %v233
    %v235 = vpop.f32.mrb[0].mxu0
    %236 = vdwg.mxu0
    %v238 = vsel %vm84, %v82, 0
    %v241 = vsel %vm84, %v70, 0
    %243 = vmatprep.subr.mxu0 0.0
    %244 = vmatpush1.xpose.msra.mxu0 %v241
    %245 = vmatprep.subr.mxu0 0.0
    %246 = vmatpush1.xpose.msra.mxu0 0.0
    %247 = vmatprep.subr.mxu0 0.0
    %248 = vmatpush1.xpose.msra.mxu0 0.0
    %249 = vmatprep.subr.mxu0 0.0
    %250 = vmatpush1.xpose.msra.mxu0 0.0
    %251 = vmatprep.subr.mxu0 0.0
    %252 = vmatpush1.xpose.msra.mxu0 0.0
    %253 = vmatprep.subr.mxu0 0.0
    %254 = vmatpush1.xpose.msra.mxu0 0.0
    %255 = vmatprep.subr.mxu0 0.0
    %256 = vmatpush1.xpose.msra.mxu0 0.0
    %257 = vmatprep.subr.mxu0 0.0
    %258 = vmatpush1.xpose.msra.mxu0 0.0
    %259 = vmatprep.subr.mxu0 0.0
    %260 = vmatpush1.xpose.msra.mxu0 0.0
    %261 = vmatprep.subr.mxu0 0.0
    %262 = vmatpush1.xpose.msra.mxu0 0.0
    %263 = vmatprep.subr.mxu0 0.0
    %264 = vmatpush1.xpose.msra.mxu0 0.0
    %265 = vmatprep.subr.mxu0 0.0
    %266 = vmatpush1.xpose.msra.mxu0 0.0
    %267 = vmatprep.subr.mxu0 0.0
    %268 = vmatpush1.xpose.msra.mxu0 0.0
    %269 = vmatprep.subr.mxu0 0.0
    %270 = vmatpush1.xpose.msra.mxu0 0.0
    %271 = vmatprep.subr.mxu0 0.0
    %272 = vmatpush1.xpose.msra.mxu0 0.0
    %273 = vmatprep.subr.mxu0 0.0
    %274 = vmatpush1.xpose.msra.mxu0 0.0
    %275 = vmatprep.subr.mxu0 0.0
    %276 = vmatpush1.xpose.msra.mxu0 0.0
    %277 = vmatprep.subr.mxu0 0.0
    %278 = vmatpush1.xpose.msra.mxu0 0.0
    %279 = vmatprep.subr.mxu0 0.0
    %280 = vmatpush1.xpose.msra.mxu0 0.0
    %281 = vmatprep.subr.mxu0 0.0
    %282 = vmatpush1.xpose.msra.mxu0 0.0
    %283 = vmatprep.subr.mxu0 0.0
    %284 = vmatpush1.xpose.msra.mxu0 0.0
    %285 = vmatprep.subr.mxu0 0.0
    %286 = vmatpush1.xpose.msra.mxu0 0.0
    %287 = vmatprep.subr.mxu0 0.0
    %288 = vmatpush1.xpose.msra.mxu0 0.0
    %289 = vmatprep.subr.mxu0 0.0
    %290 = vmatpush1.xpose.msra.mxu0 0.0
    %291 = vmatprep.subr.mxu0 0.0
    %292 = vmatpush1.xpose.msra.mxu0 0.0
    %293 = vmatprep.subr.mxu0 0.0
    %294 = vmatpush1.xpose.msra.mxu0 0.0
    %295 = vmatprep.subr.mxu0 0.0
    %296 = vmatpush1.xpose.msra.mxu0 0.0
    %297 = vmatprep.subr.mxu0 0.0
    %298 = vmatpush1.xpose.msra.mxu0 0.0
    %299 = vmatprep.subr.mxu0 0.0
    %300 = vmatpush1.xpose.msra.mxu0 0.0
    %301 = vmatprep.subr.mxu0 0.0
    %302 = vmatpush1.xpose.msra.mxu0 0.0
    %303 = vmatprep.subr.mxu0 0.0
    %304 = vmatpush1.xpose.msra.mxu0 0.0
    %305 = vmatprep.subr.mxu0 0.0
    %306 = vmatpush1.xpose.msra.mxu0 0.0
    %307 = vmatprep.mubr.f32.mxu0 0.0
    %308 = vmatmul.mubr.f32.gmra.mrb[0].mxu0 %v238
    %v309 = vpop.f32.mrb[0].mxu0
    %v310 = vadd.f32 0.0, %v309
    %v311 = vpop.f32.mrb[0].mxu0
    %312 = vdwg.mxu0
    %v314 = vsel %vm84, %v83, 0
    %v317 = vsel %vm84, %v71, 0
    %319 = vmatprep.subr.mxu0 0.0
    %320 = vmatpush1.xpose.msra.mxu0 %v317
    %321 = vmatprep.subr.mxu0 0.0
    %322 = vmatpush1.xpose.msra.mxu0 0.0
    %323 = vmatprep.subr.mxu0 0.0
    %324 = vmatpush1.xpose.msra.mxu0 0.0
    %325 = vmatprep.subr.mxu0 0.0
    %326 = vmatpush1.xpose.msra.mxu0 0.0
    %327 = vmatprep.subr.mxu0 0.0
    %328 = vmatpush1.xpose.msra.mxu0 0.0
    %329 = vmatprep.subr.mxu0 0.0
    %330 = vmatpush1.xpose.msra.mxu0 0.0
    %331 = vmatprep.subr.mxu0 0.0
    %332 = vmatpush1.xpose.msra.mxu0 0.0
    %333 = vmatprep.subr.mxu0 0.0
    %334 = vmatpush1.xpose.msra.mxu0 0.0
    %335 = vmatprep.subr.mxu0 0.0
    %336 = vmatpush1.xpose.msra.mxu0 0.0
    %337 = vmatprep.subr.mxu0 0.0
    %338 = vmatpush1.xpose.msra.mxu0 0.0
    %339 = vmatprep.subr.mxu0 0.0
    %340 = vmatpush1.xpose.msra.mxu0 0.0
    %341 = vmatprep.subr.mxu0 0.0
    %342 = vmatpush1.xpose.msra.mxu0 0.0
    %343 = vmatprep.subr.mxu0 0.0
    %344 = vmatpush1.xpose.msra.mxu0 0.0
    %345 = vmatprep.subr.mxu0 0.0
    %346 = vmatpush1.xpose.msra.mxu0 0.0
    %347 = vmatprep.subr.mxu0 0.0
    %348 = vmatpush1.xpose.msra.mxu0 0.0
    %349 = vmatprep.subr.mxu0 0.0
    %350 = vmatpush1.xpose.msra.mxu0 0.0
    %351 = vmatprep.subr.mxu0 0.0
    %352 = vmatpush1.xpose.msra.mxu0 0.0
    %353 = vmatprep.subr.mxu0 0.0
    %354 = vmatpush1.xpose.msra.mxu0 0.0
    %355 = vmatprep.subr.mxu0 0.0
    %356 = vmatpush1.xpose.msra.mxu0 0.0
    %357 = vmatprep.subr.mxu0 0.0
    %358 = vmatpush1.xpose.msra.mxu0 0.0
    %359 = vmatprep.subr.mxu0 0.0
    %360 = vmatpush1.xpose.msra.mxu0 0.0
    %361 = vmatprep.subr.mxu0 0.0
    %362 = vmatpush1.xpose.msra.mxu0 0.0
    %363 = vmatprep.subr.mxu0 0.0
    %364 = vmatpush1.xpose.msra.mxu0 0.0
    %365 = vmatprep.subr.mxu0 0.0
    %366 = vmatpush1.xpose.msra.mxu0 0.0
    %367 = vmatprep.subr.mxu0 0.0
    %368 = vmatpush1.xpose.msra.mxu0 0.0
    %369 = vmatprep.subr.mxu0 0.0
    %370 = vmatpush1.xpose.msra.mxu0 0.0
    %371 = vmatprep.subr.mxu0 0.0
    %372 = vmatpush1.xpose.msra.mxu0 0.0
    %373 = vmatprep.subr.mxu0 0.0
    %374 = vmatpush1.xpose.msra.mxu0 0.0
    %375 = vmatprep.subr.mxu0 0.0
    %376 = vmatpush1.xpose.msra.mxu0 0.0
    %377 = vmatprep.subr.mxu0 0.0
    %378 = vmatpush1.xpose.msra.mxu0 0.0
    %379 = vmatprep.subr.mxu0 0.0
    %380 = vmatpush1.xpose.msra.mxu0 0.0
    %381 = vmatprep.subr.mxu0 0.0
    %382 = vmatpush1.xpose.msra.mxu0 0.0
    %383 = vmatprep.mubr.f32.mxu0 0.0
    %384 = vmatmul.mubr.f32.gmra.mrb[0].mxu0 %v314
    %v385 = vpop.f32.mrb[0].mxu0
    %v386 = vadd.f32 0.0, %v385
    %v387 = vpop.f32.mrb[0].mxu0
    %388 = vdwg.mxu0
    %vm389 = vnez %v76
    %vm390 = vnez %v77
    %vm391 = vnez %v78
    %vm392 = vnez %v79
    %v393 = vsel %vm389, 16843009, 0
    %v394 = vsel %vm390, 16843009, 0
    %v395 = vsel %vm391, 16843009, 0
    %v396 = vsel %vm392, 16843009, 0
    %v397 = vunpack.c.0.s8 %v393
    %v398 = vunpack.c.0.s8 %v394
    %v399 = vunpack.c.0.s8 %v395
    %v400 = vunpack.c.0.s8 %v396
    %vm401 = vcmp.ne.s32.totalorder %v397, 0
    %vm402 = vcmp.ne.s32.totalorder %v398, 0
    %vm403 = vcmp.ne.s32.totalorder %v399, 0
    %vm404 = vcmp.ne.s32.totalorder %v400, 0
    %v405 = vsel %vm401, -1e+09, %v158
    %v406 = vsel %vm402, -1e+09, %v234
    %v407 = vsel %vm403, -1e+09, %v310
    %v408 = vsel %vm404, -1e+09, %v386
    %vm409 = vcmask 64512
    %v410 = vsel %vm409, %v405, -inf
    %411 = vmax.xlane.f32.xlu0 %v410
    %v412 = vpop.xlane.xlu0 %411
    %v413 = vsel %vm409, %v406, -inf
    %414 = vmax.xlane.f32.xlu0 %v413
    %v415 = vpop.xlane.xlu0 %414
    %v416 = vsel %vm409, %v407, -inf
    %417 = vmax.xlane.f32.xlu0 %v416
    %v418 = vpop.xlane.xlu0 %417
    %v419 = vsel %vm409, %v408, -inf
    %420 = vmax.xlane.f32.xlu0 %v419
    %v421 = vpop.xlane.xlu0 %420
    %v422 = vsub.f32 %v405, %v412
    %v423 = vsub.f32 %v406, %v415
    %v424 = vsub.f32 %v407, %v418
    %v425 = vsub.f32 %v408, %v421
    %v426 = vmul.f32 %v422, 1.442695
    %v427 = vpow.pop %v426
    %v428 = vmul.f32 %v423, 1.442695
    %v429 = vpow.pop %v428
    %v430 = vmul.f32 %v424, 1.442695
    %v431 = vpow.pop %v430
    %v432 = vmul.f32 %v425, 1.442695
    %v433 = vpow.pop %v432
    %v434 = vsel %vm409, %v427, 0.0
    %435 = vadd.xlane.f32.xlu0 %v434
    %v436 = vpop.xlane.xlu0 %435
    %v437 = vsel %vm409, %v429, 0.0
    %438 = vadd.xlane.f32.xlu0 %v437
    %v439 = vpop.xlane.xlu0 %438
    %v440 = vsel %vm409, %v431, 0.0
    %441 = vadd.xlane.f32.xlu0 %v440
    %v442 = vpop.xlane.xlu0 %441
    %v443 = vsel %vm409, %v433, 0.0
    %444 = vadd.xlane.f32.xlu0 %v443
    %v445 = vpop.xlane.xlu0 %444
    %v446 = vrcp.pop %v436
    %v447 = vrcp.pop %v439
    %v448 = vrcp.pop %v442
    %v449 = vrcp.pop %v445
    %v450 = vmul.f32 %v427, %v446
    %v451 = vmul.f32 %v429, %v447
    %v452 = vmul.f32 %v431, %v448
    %v453 = vmul.f32 %v433, %v449
    %454 = vst.msk [vmem:[#allocation9] sm:$0xff] %vm409, %v450
    %455 = vst.msk [vmem:[#allocation9 + $0x8] sm:$0xff] %vm409, %v451
    %456 = vst.msk [vmem:[#allocation9 + $0x10] sm:$0xff] %vm409, %v452
    %457 = vst.msk [vmem:[#allocation9 + $0x18] sm:$0xff] %vm409, %v453
    %v459 = vsel %vm409, %v450, 0
    %461 = vmatprep.subr.mxu0 0.0
    %462 = vmatpush1.msra.mxu0 %v72
    %463 = vmatprep.subr.mxu0 0.0
    %464 = vmatpush1.msra.mxu0 0.0
    %465 = vmatprep.subr.mxu0 0.0
    %466 = vmatpush1.msra.mxu0 0.0
    %467 = vmatprep.subr.mxu0 0.0
    %468 = vmatpush1.msra.mxu0 0.0
    %469 = vmatprep.subr.mxu0 0.0
    %470 = vmatpush1.msra.mxu0 0.0
    %471 = vmatprep.subr.mxu0 0.0
    %472 = vmatpush1.msra.mxu0 0.0
    %473 = vmatprep.subr.mxu0 0.0
    %474 = vmatpush1.msra.mxu0 0.0
    %475 = vmatprep.subr.mxu0 0.0
    %476 = vmatpush1.msra.mxu0 0.0
    %477 = vmatprep.subr.mxu0 0.0
    %478 = vmatpush1.msra.mxu0 0.0
    %479 = vmatprep.subr.mxu0 0.0
    %480 = vmatpush1.msra.mxu0 0.0
    %481 = vmatprep.subr.mxu0 0.0
    %482 = vmatpush1.msra.mxu0 0.0
    %483 = vmatprep.subr.mxu0 0.0
    %484 = vmatpush1.msra.mxu0 0.0
    %485 = vmatprep.subr.mxu0 0.0
    %486 = vmatpush1.msra.mxu0 0.0
    %487 = vmatprep.subr.mxu0 0.0
    %488 = vmatpush1.msra.mxu0 0.0
    %489 = vmatprep.subr.mxu0 0.0
    %490 = vmatpush1.msra.mxu0 0.0
    %491 = vmatprep.subr.mxu0 0.0
    %492 = vmatpush1.msra.mxu0 0.0
    %493 = vmatprep.subr.mxu0 0.0
    %494 = vmatpush1.msra.mxu0 0.0
    %495 = vmatprep.subr.mxu0 0.0
    %496 = vmatpush1.msra.mxu0 0.0
    %497 = vmatprep.subr.mxu0 0.0
    %498 = vmatpush1.msra.mxu0 0.0
    %499 = vmatprep.subr.mxu0 0.0
    %500 = vmatpush1.msra.mxu0 0.0
    %501 = vmatprep.subr.mxu0 0.0
    %502 = vmatpush1.msra.mxu0 0.0
    %503 = vmatprep.subr.mxu0 0.0
    %504 = vmatpush1.msra.mxu0 0.0
    %505 = vmatprep.subr.mxu0 0.0
    %506 = vmatpush1.msra.mxu0 0.0
    %507 = vmatprep.subr.mxu0 0.0
    %508 = vmatpush1.msra.mxu0 0.0
    %509 = vmatprep.subr.mxu0 0.0
    %510 = vmatpush1.msra.mxu0 0.0
    %511 = vmatprep.subr.mxu0 0.0
    %512 = vmatpush1.msra.mxu0 0.0
    %513 = vmatprep.subr.mxu0 0.0
    %514 = vmatpush1.msra.mxu0 0.0
    %515 = vmatprep.subr.mxu0 0.0
    %516 = vmatpush1.msra.mxu0 0.0
    %517 = vmatprep.subr.mxu0 0.0
    %518 = vmatpush1.msra.mxu0 0.0
    %519 = vmatprep.subr.mxu0 0.0
    %520 = vmatpush1.msra.mxu0 0.0
    %521 = vmatprep.subr.mxu0 0.0
    %522 = vmatpush1.msra.mxu0 0.0
    %523 = vmatprep.subr.mxu0 0.0
    %524 = vmatpush1.msra.mxu0 0.0
    %525 = vmatprep.mubr.f32.mxu0 0.0
    %526 = vmatmul.mubr.f32.gmra.mrb[0].mxu0 %v459
    %v527 = vpop.f32.mrb[0].mxu0
    %v528 = vadd.f32 0.0, %v527
    %v529 = vpop.f32.mrb[0].mxu0
    %530 = vdwg.mxu0
    %v532 = vsel %vm409, %v451, 0
    %534 = vmatprep.subr.mxu0 0.0
    %535 = vmatpush1.msra.mxu0 %v73
    %536 = vmatprep.subr.mxu0 0.0
    %537 = vmatpush1.msra.mxu0 0.0
    %538 = vmatprep.subr.mxu0 0.0
    %539 = vmatpush1.msra.mxu0 0.0
    %540 = vmatprep.subr.mxu0 0.0
    %541 = vmatpush1.msra.mxu0 0.0
    %542 = vmatprep.subr.mxu0 0.0
    %543 = vmatpush1.msra.mxu0 0.0
    %544 = vmatprep.subr.mxu0 0.0
    %545 = vmatpush1.msra.mxu0 0.0
    %546 = vmatprep.subr.mxu0 0.0
    %547 = vmatpush1.msra.mxu0 0.0
    %548 = vmatprep.subr.mxu0 0.0
    %549 = vmatpush1.msra.mxu0 0.0
    %550 = vmatprep.subr.mxu0 0.0
    %551 = vmatpush1.msra.mxu0 0.0
    %552 = vmatprep.subr.mxu0 0.0
    %553 = vmatpush1.msra.mxu0 0.0
    %554 = vmatprep.subr.mxu0 0.0
    %555 = vmatpush1.msra.mxu0 0.0
    %556 = vmatprep.subr.mxu0 0.0
    %557 = vmatpush1.msra.mxu0 0.0
    %558 = vmatprep.subr.mxu0 0.0
    %559 = vmatpush1.msra.mxu0 0.0
    %560 = vmatprep.subr.mxu0 0.0
    %561 = vmatpush1.msra.mxu0 0.0
    %562 = vmatprep.subr.mxu0 0.0
    %563 = vmatpush1.msra.mxu0 0.0
    %564 = vmatprep.subr.mxu0 0.0
    %565 = vmatpush1.msra.mxu0 0.0
    %566 = vmatprep.subr.mxu0 0.0
    %567 = vmatpush1.msra.mxu0 0.0
    %568 = vmatprep.subr.mxu0 0.0
    %569 = vmatpush1.msra.mxu0 0.0
    %570 = vmatprep.subr.mxu0 0.0
    %571 = vmatpush1.msra.mxu0 0.0
    %572 = vmatprep.subr.mxu0 0.0
    %573 = vmatpush1.msra.mxu0 0.0
    %574 = vmatprep.subr.mxu0 0.0
    %575 = vmatpush1.msra.mxu0 0.0
    %576 = vmatprep.subr.mxu0 0.0
    %577 = vmatpush1.msra.mxu0 0.0
    %578 = vmatprep.subr.mxu0 0.0
    %579 = vmatpush1.msra.mxu0 0.0
    %580 = vmatprep.subr.mxu0 0.0
    %581 = vmatpush1.msra.mxu0 0.0
    %582 = vmatprep.subr.mxu0 0.0
    %583 = vmatpush1.msra.mxu0 0.0
    %584 = vmatprep.subr.mxu0 0.0
    %585 = vmatpush1.msra.mxu0 0.0
    %586 = vmatprep.subr.mxu0 0.0
    %587 = vmatpush1.msra.mxu0 0.0
    %588 = vmatprep.subr.mxu0 0.0
    %589 = vmatpush1.msra.mxu0 0.0
    %590 = vmatprep.subr.mxu0 0.0
    %591 = vmatpush1.msra.mxu0 0.0
    %592 = vmatprep.subr.mxu0 0.0
    %593 = vmatpush1.msra.mxu0 0.0
    %594 = vmatprep.subr.mxu0 0.0
    %595 = vmatpush1.msra.mxu0 0.0
    %596 = vmatprep.subr.mxu0 0.0
    %597 = vmatpush1.msra.mxu0 0.0
    %598 = vmatprep.mubr.f32.mxu0 0.0
    %599 = vmatmul.mubr.f32.gmra.mrb[0].mxu0 %v532
    %v600 = vpop.f32.mrb[0].mxu0
    %v601 = vadd.f32 0.0, %v600
    %v602 = vpop.f32.mrb[0].mxu0
    %603 = vdwg.mxu0
    %v605 = vsel %vm409, %v452, 0
    %607 = vmatprep.subr.mxu0 0.0
    %608 = vmatpush1.msra.mxu0 %v74
    %609 = vmatprep.subr.mxu0 0.0
    %610 = vmatpush1.msra.mxu0 0.0
    %611 = vmatprep.subr.mxu0 0.0
    %612 = vmatpush1.msra.mxu0 0.0
    %613 = vmatprep.subr.mxu0 0.0
    %614 = vmatpush1.msra.mxu0 0.0
    %615 = vmatprep.subr.mxu0 0.0
    %616 = vmatpush1.msra.mxu0 0.0
    %617 = vmatprep.subr.mxu0 0.0
    %618 = vmatpush1.msra.mxu0 0.0
    %619 = vmatprep.subr.mxu0 0.0
    %620 = vmatpush1.msra.mxu0 0.0
    %621 = vmatprep.subr.mxu0 0.0
    %622 = vmatpush1.msra.mxu0 0.0
    %623 = vmatprep.subr.mxu0 0.0
    %624 = vmatpush1.msra.mxu0 0.0
    %625 = vmatprep.subr.mxu0 0.0
    %626 = vmatpush1.msra.mxu0 0.0
    %627 = vmatprep.subr.mxu0 0.0
    %628 = vmatpush1.msra.mxu0 0.0
    %629 = vmatprep.subr.mxu0 0.0
    %630 = vmatpush1.msra.mxu0 0.0
    %631 = vmatprep.subr.mxu0 0.0
    %632 = vmatpush1.msra.mxu0 0.0
    %633 = vmatprep.subr.mxu0 0.0
    %634 = vmatpush1.msra.mxu0 0.0
    %635 = vmatprep.subr.mxu0 0.0
    %636 = vmatpush1.msra.mxu0 0.0
    %637 = vmatprep.subr.mxu0 0.0
    %638 = vmatpush1.msra.mxu0 0.0
    %639 = vmatprep.subr.mxu0 0.0
    %640 = vmatpush1.msra.mxu0 0.0
    %641 = vmatprep.subr.mxu0 0.0
    %642 = vmatpush1.msra.mxu0 0.0
    %643 = vmatprep.subr.mxu0 0.0
    %644 = vmatpush1.msra.mxu0 0.0
    %645 = vmatprep.subr.mxu0 0.0
    %646 = vmatpush1.msra.mxu0 0.0
    %647 = vmatprep.subr.mxu0 0.0
    %648 = vmatpush1.msra.mxu0 0.0
    %649 = vmatprep.subr.mxu0 0.0
    %650 = vmatpush1.msra.mxu0 0.0
    %651 = vmatprep.subr.mxu0 0.0
    %652 = vmatpush1.msra.mxu0 0.0
    %653 = vmatprep.subr.mxu0 0.0
    %654 = vmatpush1.msra.mxu0 0.0
    %655 = vmatprep.subr.mxu0 0.0
    %656 = vmatpush1.msra.mxu0 0.0
    %657 = vmatprep.subr.mxu0 0.0
    %658 = vmatpush1.msra.mxu0 0.0
    %659 = vmatprep.subr.mxu0 0.0
    %660 = vmatpush1.msra.mxu0 0.0
    %661 = vmatprep.subr.mxu0 0.0
    %662 = vmatpush1.msra.mxu0 0.0
    %663 = vmatprep.subr.mxu0 0.0
    %664 = vmatpush1.msra.mxu0 0.0
    %665 = vmatprep.subr.mxu0 0.0
    %666 = vmatpush1.msra.mxu0 0.0
    %667 = vmatprep.subr.mxu0 0.0
    %668 = vmatpush1.msra.mxu0 0.0
    %669 = vmatprep.subr.mxu0 0.0
    %670 = vmatpush1.msra.mxu0 0.0
    %671 = vmatprep.mubr.f32.mxu0 0.0
    %672 = vmatmul.mubr.f32.gmra.mrb[0].mxu0 %v605
    %v673 = vpop.f32.mrb[0].mxu0
    %v674 = vadd.f32 0.0, %v673
    %v675 = vpop.f32.mrb[0].mxu0
    %676 = vdwg.mxu0
    %v678 = vsel %vm409, %v453, 0
    %680 = vmatprep.subr.mxu0 0.0
    %681 = vmatpush1.msra.mxu0 %v75
    %682 = vmatprep.subr.mxu0 0.0
    %683 = vmatpush1.msra.mxu0 0.0
    %684 = vmatprep.subr.mxu0 0.0
    %685 = vmatpush1.msra.mxu0 0.0
    %686 = vmatprep.subr.mxu0 0.0
    %687 = vmatpush1.msra.mxu0 0.0
    %688 = vmatprep.subr.mxu0 0.0
    %689 = vmatpush1.msra.mxu0 0.0
    %690 = vmatprep.subr.mxu0 0.0
    %691 = vmatpush1.msra.mxu0 0.0
    %692 = vmatprep.subr.mxu0 0.0
    %693 = vmatpush1.msra.mxu0 0.0
    %694 = vmatprep.subr.mxu0 0.0
    %695 = vmatpush1.msra.mxu0 0.0
    %696 = vmatprep.subr.mxu0 0.0
    %697 = vmatpush1.msra.mxu0 0.0
    %698 = vmatprep.subr.mxu0 0.0
    %699 = vmatpush1.msra.mxu0 0.0
    %700 = vmatprep.subr.mxu0 0.0
    %701 = vmatpush1.msra.mxu0 0.0
    %702 = vmatprep.subr.mxu0 0.0
    %703 = vmatpush1.msra.mxu0 0.0
    %704 = vmatprep.subr.mxu0 0.0
    %705 = vmatpush1.msra.mxu0 0.0
    %706 = vmatprep.subr.mxu0 0.0
    %707 = vmatpush1.msra.mxu0 0.0
    %708 = vmatprep.subr.mxu0 0.0
    %709 = vmatpush1.msra.mxu0 0.0
    %710 = vmatprep.subr.mxu0 0.0
    %711 = vmatpush1.msra.mxu0 0.0
    %712 = vmatprep.subr.mxu0 0.0
    %713 = vmatpush1.msra.mxu0 0.0
    %714 = vmatprep.subr.mxu0 0.0
    %715 = vmatpush1.msra.mxu0 0.0
    %716 = vmatprep.subr.mxu0 0.0
    %717 = vmatpush1.msra.mxu0 0.0
    %718 = vmatprep.subr.mxu0 0.0
    %719 = vmatpush1.msra.mxu0 0.0
    %720 = vmatprep.subr.mxu0 0.0
    %721 = vmatpush1.msra.mxu0 0.0
    %722 = vmatprep.subr.mxu0 0.0
    %723 = vmatpush1.msra.mxu0 0.0
    %724 = vmatprep.subr.mxu0 0.0
    %725 = vmatpush1.msra.mxu0 0.0
    %726 = vmatprep.subr.mxu0 0.0
    %727 = vmatpush1.msra.mxu0 0.0
    %728 = vmatprep.subr.mxu0 0.0
    %729 = vmatpush1.msra.mxu0 0.0
    %730 = vmatprep.subr.mxu0 0.0
    %731 = vmatpush1.msra.mxu0 0.0
    %732 = vmatprep.subr.mxu0 0.0
    %733 = vmatpush1.msra.mxu0 0.0
    %734 = vmatprep.subr.mxu0 0.0
    %735 = vmatpush1.msra.mxu0 0.0
    %736 = vmatprep.subr.mxu0 0.0
    %737 = vmatpush1.msra.mxu0 0.0
    %738 = vmatprep.subr.mxu0 0.0
    %739 = vmatpush1.msra.mxu0 0.0
    %740 = vmatprep.subr.mxu0 0.0
    %741 = vmatpush1.msra.mxu0 0.0
    %742 = vmatprep.subr.mxu0 0.0
    %743 = vmatpush1.msra.mxu0 0.0
    %744 = vmatprep.mubr.f32.mxu0 0.0
    %745 = vmatmul.mubr.f32.gmra.mrb[0].mxu0 %v678
    %v746 = vpop.f32.mrb[0].mxu0
    %v747 = vadd.f32 0.0, %v746
    %v748 = vpop.f32.mrb[0].mxu0
    %749 = vdwg.mxu0
    %750 = vst.msk [vmem:[#allocation8] sm:$0xff] %vm84, %v528
    %751 = vst.msk [vmem:[#allocation8 + $0x8] sm:$0xff] %vm84, %v601
    %752 = vst.msk [vmem:[#allocation8 + $0x10] sm:$0xff] %vm84, %v674
    %753 = vst.msk [vmem:[#allocation8 + $0x18] sm:$0xff] %vm84, %v747
    // Predicated region
    $region30: #{tpu_custom_call.1} parent=1 // pred_check
      _
    $region31: #{tpu_custom_call.1} parent=1 // pred_check_branch
      %755 = sbr.rel (0) target = $region33
    $region32: #{tpu_custom_call.1} parent=1 // pred_region
      %s757 = ssub.s32 512, 512
      %758 = vsyncadd [#allocation4], %s757
      %s759 = sshll.u32 [#allocation8], 4
      %s760 = int_to_ptr.vmem [resolvable:$true] %s759
      %765 = dma.vmem_to_hbm [thread:$0]  %s760, 512, %s4, [#allocation4], 128, 128, 8
    $region33: #{tpu_custom_call.1} parent=1 // pred_fallthru
      _
    // Predicated region
    $region34: #{tpu_custom_call.1} parent=1 // pred_check
      _
    $region35: #{tpu_custom_call.1} parent=1 // pred_check_branch
      %767 = sbr.rel (0) target = $region37
    $region36: #{tpu_custom_call.1} parent=1 // pred_region
      %s769 = ssub.s32 512, 512
      %770 = vsyncadd [#allocation10], %s769
      %s771 = sshll.u32 [#allocation9], 4
      %s772 = int_to_ptr.vmem [resolvable:$true] %s771
      %777 = dma.vmem_to_hbm [thread:$0]  %s772, 512, %s5, [#allocation10], 128, 128, 8
    $region37: #{tpu_custom_call.1} parent=1 // pred_fallthru
      _
    // Predicated region
    $region38: #{tpu_custom_call.1} parent=1 // pred_check
      _
    $region39: #{tpu_custom_call.1} parent=1 // pred_check_branch
      %779 = sbr.rel (0) target = $region41
    $region40: #{tpu_custom_call.1} parent=1 // pred_region
      %780 = dma.done [#allocation4], 512
    $region41: #{tpu_custom_call.1} parent=1 // pred_fallthru
      _
    // Predicated region
    $region42: #{tpu_custom_call.1} parent=1 // pred_check
      _
    $region43: #{tpu_custom_call.1} parent=1 // pred_check_branch
      %782 = sbr.rel (0) target = $region45
    $region44: #{tpu_custom_call.1} parent=1 // pred_region
      %783 = dma.done [#allocation10], 512
    $region45: #{tpu_custom_call.1} parent=1 // pred_fallthru
      _
    %784 = vsyncpa [#allocation3], 1
    %785 = vsyncpa [#allocation6], 1
    %786 = vsyncpa [#allocation4], 1
    %787 = vsyncpa [#allocation10], 1

</llo_original>
